<compile_context>
chip_gen: v7x
topology: tpu7x:2x2x1
jax: 0.10.0
libtpu: 0.0.40
codegen_flags: <defaults>
</compile_context>

<pallas_src>
import jax
import jax.numpy as jnp
from jax.experimental import pallas as pl
from jax.experimental.pallas import tpu as pltpu


# ------------------------------ chip config -------------------------------- #

_VMEM_CFG = None


def _vmem_config():
    """(vmem_limit_bytes, working-set budget), gated on physical VMEM size."""
    global _VMEM_CFG
    if _VMEM_CFG is None:
        cap = 64 * 1024 * 1024
        try:
            cap = int(getattr(pltpu.get_tpu_info(), "vmem_capacity_bytes", cap))
        except Exception:
            pass
        if cap >= 100 * 1024 * 1024:          # v5e / v6e: 128 MiB physical
            _VMEM_CFG = (96 * 1024 * 1024, 60 * 1024 * 1024)
        else:                                  # v7x: 64 MiB per TensorCore
            _VMEM_CFG = (48 * 1024 * 1024, 30 * 1024 * 1024)
    return _VMEM_CFG


# ------------------------------ Pallas kernels ----------------------------- #

def _mm_bias_relu_kernel(a_ref, w_ref, b_ref, o_ref):
    # grid = (M tiles, N tiles, K tiles); K (reduction) is last.
    # o_ref doubles as the f32 accumulator (its index_map ignores k).
    @pl.when(pl.program_id(2) == 0)
    def _init():
        o_ref[...] = jnp.zeros_like(o_ref)

    o_ref[...] += jnp.dot(a_ref[...], w_ref[...],
                          preferred_element_type=jnp.float32)

    @pl.when(pl.program_id(2) == pl.num_programs(2) - 1)
    def _finalize():
        o_ref[...] = jnp.maximum(o_ref[...] + b_ref[...], 0.0)


def _mmt_bias_relu_kernel(w_ref, a_ref, b_ref, o_ref):
    # Transposed problem for lane-dense stores when Cout < 128:
    #   O^T (N, M) = W^T (N, K) @ A^T (K, M); the huge M dim sits in lanes.
    y = jnp.dot(w_ref[...], a_ref[...], preferred_element_type=jnp.float32)
    o_ref[...] = jnp.maximum(y + b_ref[...], 0.0)


# ------------------------------ tiling helpers ------------------------------ #

def _round_up(x, m):
    return (x + m - 1) // m * m


def _pick_divisor(dim, cap, mult):
    """Largest divisor of `dim` that is a multiple of `mult` and <= cap."""
    best = 0
    d = mult
    top = min(dim, cap)
    while d <= top:
        if dim % d == 0:
            best = d
        d += mult
    return best if best else dim


def _pick_tn(N):
    if N % 128 != 0 or N <= 128:
        return N                       # full-dim block is legal
    if N >= 2048:
        return _pick_divisor(N, 1024, 128)   # >= 2 parallel N tiles (megacore)
    half = N // 2
    return half if half % 128 == 0 else N


def _pick_tk(K):
    return K if K % 128 != 0 else _pick_divisor(K, 4096, 128)


_TM_CANDIDATES = (2048, 1024, 512, 256, 128, 64, 32, 16)


def _pick_tm(M, tk, tn, budget):
    m_cap = _round_up(M, 16)
    for tm in _TM_CANDIDATES:
        cost = (2 * _round_up(tm, 16) * tk * 2                 # A (bf16), 2 bufs
                + 2 * tk * tn * 2                              # W (bf16), 2 bufs
                + 2 * _round_up(tm, 8) * _round_up(tn, 128) * 4)  # out f32, 2 bufs
        if cost <= budget:
            return min(tm, m_cap)
    return min(16, m_cap)


_LANE_TILE_CANDIDATES = (32768, 16384, 8192, 4096, 2048, 1024, 512, 256, 128)


def _pick_lane_tile(K, N, M, budget):
    m_cap = _round_up(M, 128)
    for tm in _LANE_TILE_CANDIDATES:
        if tm > m_cap:
            continue
        cost = (2 * _round_up(K, 16) * tm * 2                  # A^T (bf16), 2 bufs
                + 2 * _round_up(N, 8) * tm * 4                 # out (f32), 2 bufs
                + _round_up(N, 16) * _round_up(K, 128) * 2)    # W^T (bf16)
        if cost <= budget:
            return tm
    return 128


# ------------------------------ matmul wrappers ----------------------------- #

def matmul_bias_relu(a, w, bias):
    """relu(a @ w + bias): a (M,K) bf16, w (K,N) bf16, bias (N,) -> (M,N) f32."""
    M, K = a.shape
    Kw, N = w.shape
    assert K == Kw
    limit, budget = _vmem_config()
    tk, tn = _pick_tk(K), _pick_tn(N)
    tm = _pick_tm(M, tk, tn, budget)
    Mp = _round_up(M, tm)
    if Mp != M:
        a = jnp.pad(a, ((0, Mp - M), (0, 0)))
    b = bias.astype(jnp.float32).reshape(1, N)

    out = pl.pallas_call(
        _mm_bias_relu_kernel,
        out_shape=jax.ShapeDtypeStruct((Mp, N), jnp.float32),
        grid_spec=pltpu.PrefetchScalarGridSpec(
            num_scalar_prefetch=0,
            grid=(Mp // tm, N // tn, K // tk),
            in_specs=[
                pl.BlockSpec((tm, tk), lambda i, j, k: (i, k)),
                pl.BlockSpec((tk, tn), lambda i, j, k: (k, j)),
                pl.BlockSpec((1, tn), lambda i, j, k: (0, j)),
            ],
            out_specs=pl.BlockSpec((tm, tn), lambda i, j, k: (i, j)),
        ),
        compiler_params=pltpu.CompilerParams(
            dimension_semantics=("parallel", "parallel", "arbitrary"),
            vmem_limit_bytes=limit,
        ),
    )(a.astype(jnp.bfloat16), w, b)
    return out if Mp == M else out[:M]


def matmul_t_bias_relu(w_t, a_t, bias):
    """relu(w_t @ a_t + bias[:,None]): w_t (N,K) bf16, a_t (K,M) bf16 -> (N,M) f32."""
    N, K = w_t.shape
    Ka, M = a_t.shape
    assert K == Ka
    limit, budget = _vmem_config()
    tm = _pick_lane_tile(K, N, M, budget)
    Mp = _round_up(M, tm)
    if Mp != M:
        a_t = jnp.pad(a_t, ((0, 0), (0, Mp - M)))
    b = bias.astype(jnp.float32).reshape(N, 1)

    out = pl.pallas_call(
        _mmt_bias_relu_kernel,
        out_shape=jax.ShapeDtypeStruct((N, Mp), jnp.float32),
        grid_spec=pltpu.PrefetchScalarGridSpec(
            num_scalar_prefetch=0,
            grid=(Mp // tm,),
            in_specs=[
                pl.BlockSpec((N, K), lambda i: (0, 0)),
                pl.BlockSpec((K, tm), lambda i: (0, i)),
                pl.BlockSpec((N, 1), lambda i: (0, 0)),
            ],
            out_specs=pl.BlockSpec((N, tm), lambda i: (0, i)),
        ),
        compiler_params=pltpu.CompilerParams(
            dimension_semantics=("parallel",),
            vmem_limit_bytes=limit,
        ),
    )(w_t, a_t.astype(jnp.bfloat16), b)
    return out if Mp == M else out[:, :M]


# -------------------- ConvTranspose2d via phase decomposition -------------- #

_STRIDE = (2, 2)
_KSIZE = (3, 3)


def _phase_taps(r, p, ksize, s):
    """Taps k contributing to output phase r: o = r + s*m reads x[m + c]."""
    return [(k, (r + p - k) // s) for k in range(ksize) if (r + p - k) % s == 0]


def _phase_geometry(r, p, ksize, s, in_len, out_len):
    taps = _phase_taps(r, p, ksize, s)
    n_out = (out_len - r + s - 1) // s
    lo = min(c for _, c in taps)
    hi = max(c for _, c in taps) + n_out - 1
    return taps, n_out, max(0, -lo), max(0, hi - (in_len - 1))


def pack_convt_weight(wt, padding, small_n):
    """Pre-pack ConvT weight (Cin,Cout,3,3) into per-phase bf16 matmul operands."""
    cin, cout, kh, kw = wt.shape
    ph, pw = padding
    sh, sw = _STRIDE
    phase_w = []
    for rh in range(sh):
        taps_h = _phase_taps(rh, ph, kh, sh)
        row = []
        for rw in range(sw):
            taps_w = _phase_taps(rw, pw, kw, sw)
            cols = [wt[:, :, k_h, k_w]                     # (Cin, Cout)
                    for k_h, _ in taps_h for k_w, _ in taps_w]
            wmat = jnp.concatenate(cols, axis=0)           # (T*Cin, Cout)
            if small_n:
                wmat = wmat.T                              # (Cout, T*Cin)
            row.append(wmat.astype(jnp.bfloat16))
        phase_w.append(row)
    return phase_w


def _interleave_phases(phases, h_out, w_out):
    """phases[r_h][r_w]: (N, n_h, n_w, C) -> (N, h_out, w_out, C)."""
    sh, sw = len(phases), len(phases[0])
    n, _, _, c = phases[0][0].shape
    hm = -(-h_out // sh)
    wm = -(-w_out // sw)
    rows = []
    for prow in phases:
        padded = []
        for y in prow:
            dh, dw = hm - y.shape[1], wm - y.shape[2]
            if dh or dw:
                y = jnp.pad(y, ((0, 0), (0, dh), (0, dw), (0, 0)))
            padded.append(y)
        rows.append(jnp.stack(padded, axis=0))             # (sw, n, hm, wm, c)
    a = jnp.stack(rows, axis=0)                            # (sh, sw, n, hm, wm, c)
    a = a.transpose(2, 3, 0, 4, 1, 5)                      # (n, hm, sh, wm, sw, c)
    return a.reshape(n, hm * sh, wm * sw, c)[:, :h_out, :w_out, :]


def conv_transpose2d_relu(x, phase_w, bias, padding, output_padding):
    """PyTorch ConvTranspose2d(k=3, s=2) + fused ReLU.  x: NHWC, pre-packed W."""
    sh, sw = _STRIDE
    kh, kw = _KSIZE
    ph, pw = padding
    oph, opw = output_padding
    n, h, w, cin = x.shape
    cout = bias.shape[0]
    small_n = cout < 128
    h_out = (h - 1) * sh - 2 * ph + kh + oph
    w_out = (w - 1) * sw - 2 * pw + kw + opw

    x = x.astype(jnp.bfloat16)                   # cast BEFORE patch building
    x_cm = jnp.moveaxis(x, -1, 1) if small_n else None    # (n, Cin, H, W)

    phases = []
    for rh in range(sh):
        taps_h, n_h, plo_h, phi_h = _phase_geometry(rh, ph, kh, sh, h, h_out)
        row = []
        for rw in range(sw):
            taps_w, n_w, plo_w, phi_w = _phase_geometry(rw, pw, kw, sw, w, w_out)
            wmat = phase_w[rh][rw]
            m = n * n_h * n_w
            if small_n:
                xp = jnp.pad(x_cm, ((0, 0), (0, 0),
                                    (plo_h, phi_h), (plo_w, phi_w)))
                rows_t = []
                for _, c_h in taps_h:
                    for _, c_w in taps_w:
                        sl = xp[:, :, c_h + plo_h:c_h + plo_h + n_h,
                                      c_w + plo_w:c_w + plo_w + n_w]
                        rows_t.append(jnp.moveaxis(sl, 1, 0).reshape(cin, m))
                a_t = jnp.concatenate(rows_t, axis=0)          # (T*Cin, M)
                y = matmul_t_bias_relu(wmat, a_t, bias)        # (Cout, M)
                y = jnp.moveaxis(y.reshape(cout, n, n_h, n_w), 0, -1)
            else:
                xp = jnp.pad(x, ((0, 0), (plo_h, phi_h),
                                 (plo_w, phi_w), (0, 0)))
                slabs = []
                for _, c_h in taps_h:
                    for _, c_w in taps_w:
                        slabs.append(xp[:, c_h + plo_h:c_h + plo_h + n_h,
                                           c_w + plo_w:c_w + plo_w + n_w, :])
                patches = jnp.concatenate(slabs, axis=-1).reshape(m, -1)
                y = matmul_bias_relu(patches, wmat, bias)
                y = y.reshape(n, n_h, n_w, cout)
            row.append(y)
        phases.append(row)
    return _interleave_phases(phases, h_out, w_out)


# ------------------------------ Conv2d / BN -------------------------------- #

def pack_conv_weight(wc, small_n):
    """Pre-pack Conv2d weight (Cout,Cin,3,3) -> bf16 matmul operand."""
    cout, cin, kh, kw = wc.shape
    if small_n:
        return wc.transpose(0, 2, 3, 1).reshape(cout, kh * kw * cin).astype(jnp.bfloat16)
    return wc.transpose(2, 3, 1, 0).reshape(kh * kw * cin, cout).astype(jnp.bfloat16)


def conv2d_relu(x, wmat, bias, padding):
    """PyTorch Conv2d 3x3 stride 1 + fused ReLU.  x: NHWC, pre-packed W."""
    ph, pw = padding
    kh, kw = _KSIZE
    n, h, w, cin = x.shape
    cout = bias.shape[0]
    small_n = cout < 128
    ho, wo = h + 2 * ph - kh + 1, w + 2 * pw - kw + 1
    m = n * ho * wo
    x = x.astype(jnp.bfloat16)
    if small_n:
        xp = jnp.pad(jnp.moveaxis(x, -1, 1), ((0, 0), (0, 0), (ph, ph), (pw, pw)))
        rows_t = [jnp.moveaxis(xp[:, :, i:i + ho, j:j + wo], 1, 0).reshape(cin, m)
                  for i in range(kh) for j in range(kw)]
        a_t = jnp.concatenate(rows_t, axis=0)                 # (9*Cin, M)
        y = matmul_t_bias_relu(wmat, a_t, bias)               # (Cout, M)
        return jnp.moveaxis(y.reshape(cout, n, ho, wo), 0, -1)
    xp = jnp.pad(x, ((0, 0), (ph, ph), (pw, pw), (0, 0)))
    slabs = [xp[:, i:i + ho, j:j + wo, :] for i in range(kh) for j in range(kw)]
    patches = jnp.concatenate(slabs, axis=-1).reshape(m, -1)
    return matmul_bias_relu(patches, wmat, bias).reshape(n, ho, wo, cout)


def batchnorm2d_train(x, eps=1e-5):
    # PyTorch BatchNorm2d at init in training mode (weight=1, bias=0):
    # per-channel batch statistics, biased variance.  Plain JAX (activations
    # here are tiny next to the weight streams).
    x = x.astype(jnp.float32)
    mean = jnp.mean(x, axis=(0, 1, 2), keepdims=True)
    var = jnp.mean(jnp.square(x - mean), axis=(0, 1, 2), keepdims=True)
    return (x - mean) * jax.lax.rsqrt(var + eps)


# --------------------------- model definition ------------------------------ #

_CONVT_CFG = [  # cin, cout, padding, output_padding  (kernel (3,3), stride (2,2))
    (3072, 3072, (0, 1), (0, 1)),
    (3072, 3072, (1, 1), (0, 1)),
    (3072, 768, (1, 1), (0, 0)),
    (768, 192, (1, 1), (0, 1)),
    (192, 48, (1, 1), (1, 1)),
    (48, 12, (1, 1), (1, 1)),
    (12, 12, (1, 1), (0, 1)),
    (12, 3, (1, 1), (1, 1)),
]
_CONV_CFG = [(3, 3), (3, 3), (3, 3)]  # cin, cout; kernel 3x3, stride 1, pad 1


def init_raw_params(key):
    raw = []
    for cin, cout, _, _ in _CONVT_CFG:
        key, k1, k2 = jax.random.split(key, 3)
        scale = 1.0 / jnp.sqrt(cin * 9.0)
        w = jax.random.normal(k1, (cin, cout, 3, 3), jnp.float32) * scale
        b = jax.random.normal(k2, (cout,), jnp.float32) * 0.01
        raw.append((w, b))
    for cin, cout in _CONV_CFG:
        key, k1, k2 = jax.random.split(key, 3)
        scale = 1.0 / jnp.sqrt(cin * 9.0)
        w = jax.random.normal(k1, (cout, cin, 3, 3), jnp.float32) * scale
        b = jax.random.normal(k2, (cout,), jnp.float32) * 0.01
        raw.append((w, b))
    return raw


def pack_params(raw):
    """One-time pre-pack: tap slicing + concat + bf16 cast outside the forward."""
    packed = []
    idx = 0
    for _, cout, pad, _ in _CONVT_CFG:
        w, b = raw[idx]; idx += 1
        packed.append((pack_convt_weight(w, pad, cout < 128),
                       b.astype(jnp.float32)))
    for _, cout in _CONV_CFG:
        w, b = raw[idx]; idx += 1
        packed.append((pack_conv_weight(w, cout < 128), b.astype(jnp.float32)))
    return packed


def forward(packed, img_nchw):
    x = jnp.transpose(img_nchw, (0, 2, 3, 1))      # NCHW -> NHWC
    idx = 0
    for _, _, pad, opad in _CONVT_CFG:
        pw_, b = packed[idx]; idx += 1
        x = conv_transpose2d_relu(x, pw_, b, pad, opad)   # ConvT + fused ReLU
        x = batchnorm2d_train(x)                          # BatchNorm2d
    for li, _ in enumerate(_CONV_CFG):
        wm, b = packed[idx]; idx += 1
        x = conv2d_relu(x, wm, b, (1, 1))                 # Conv + fused ReLU
        if li < len(_CONV_CFG) - 1:                       # no BN after final ReLU
            x = batchnorm2d_train(x)
    return jnp.transpose(x, (0, 3, 1, 2))           # NHWC -> NCHW


# ------------------------------ self-tests --------------------------------- #

def _convt_reference(x, wt, bias, padding, output_padding):
    sh, sw = _STRIDE
    ph, pw = padding
    oph, opw = output_padding
    cin, cout, kh, kw = wt.shape
    n, h, w, _ = x.shape
    xd = jnp.zeros((n, (h - 1) * sh + 1, (w - 1) * sw + 1, cin), jnp.float32)
    xd = xd.at[:, ::sh, ::sw, :].set(x.astype(jnp.float32))
    xd = jnp.pad(xd, ((0, 0), (kh - 1 - ph, kh - 1 - ph + oph),
                      (kw - 1 - pw, kw - 1 - pw + opw), (0, 0)))
    whwio = jnp.transpose(wt[:, :, ::-1, ::-1], (2, 3, 0, 1)).astype(jnp.float32)
    y = jax.lax.conv_general_dilated(xd, whwio, (1, 1), "VALID",
                                     dimension_numbers=("NHWC", "HWIO", "NHWC"))
    return jnp.maximum(y + bias, 0.0)


def _conv_reference(x, wc, bias, padding):
    whwio = jnp.transpose(wc, (2, 3, 1, 0)).astype(jnp.float32)
    pads = [(padding[0], padding[0]), (padding[1], padding[1])]
    y = jax.lax.conv_general_dilated(x.astype(jnp.float32), whwio, (1, 1), pads,
                                     dimension_numbers=("NHWC", "HWIO", "NHWC"))
    return jnp.maximum(y + bias, 0.0)


def _assert_close(got, want, tol=2.5e-2, what=""):
    err = float(jnp.max(jnp.abs(got - want)))
    scale = float(jnp.max(jnp.abs(want))) + 1e-6
    assert err <= tol * scale, (what, err, scale)


def _self_test(key):
    # Covers both matmul paths (grid kernel for N>=128, transposed small-N
    # kernel) and the padding / output_padding classes the model uses.
    cfgs = [
        (16, 8, (0, 1), (0, 1), (2, 3, 4, 16)),     # small-N (transposed) path
        (16, 128, (1, 1), (1, 1), (1, 4, 5, 16)),   # grid-kernel path
        (16, 8, (1, 1), (0, 0), (1, 5, 3, 16)),
    ]
    for t, (cin, cout, pad, opad, shape) in enumerate(cfgs):
        ka, kb, kc = jax.random.split(jax.random.fold_in(key, t), 3)
        x = jax.random.normal(ka, shape, jnp.float32)
        wt = jax.random.normal(kb, (cin, cout, 3, 3), jnp.float32) * 0.2
        b = jax.random.normal(kc, (cout,), jnp.float32) * 0.1
        got = conv_transpose2d_relu(x, pack_convt_weight(wt, pad, cout < 128),
                                    b, pad, opad)
        _assert_close(got, _convt_reference(x, wt, b, pad, opad),
                      what=f"convT cout={cout} pad={pad} opad={opad}")
    ka, kb, kc = jax.random.split(jax.random.fold_in(key, 99), 3)
    x = jax.random.normal(ka, (2, 7, 9, 3), jnp.float32)
    wc = jax.random.normal(kb, (3, 3, 3, 3), jnp.float32) * 0.2
    b = jax.random.normal(kc, (3,), jnp.float32) * 0.1
    got = conv2d_relu(x, pack_conv_weight(wc, True), b, (1, 1))
    _assert_close(got, _conv_reference(x, wc, b, (1, 1)), what="conv3x3")


# --------------------------------- main ------------------------------------ #

if __name__ == "__main__":
    key = jax.random.PRNGKey(0)
    pkey, xkey, tkey = jax.random.split(key, 3)

    _self_test(tkey)

    params = pack_params(init_raw_params(pkey))
    # Input implied by the module: NCHW, 3072 channels, small spatial extent.
    img = jax.random.normal(xkey, (1, 3072, 2, 2), jnp.float32)

    out = jax.jit(forward)(params, img)
    out = jax.block_until_ready(out)

    assert out.shape == (1, 3, 526, 480), out.shape
    assert bool(jnp.all(jnp.isfinite(out)))
    print("KERNEL_OK")
</pallas_src>

<mosaic_0001>
module attributes {stable_mosaic.version = 11 : i64} {
  func.func @_mmt_bias_relu_kernel(%arg0: i32, %arg1: memref<8x32xbf16, #tpu.memory_space<vmem>>, %arg2: memref<32x128xbf16, #tpu.memory_space<vmem>>, %arg3: memref<8x1xf32, #tpu.memory_space<vmem>>, %arg4: memref<8x128xf32, #tpu.memory_space<vmem>>) attributes {dimension_semantics = [#tpu.dimension_semantics<parallel>], iteration_bounds = array<i64: 1>, scalar_prefetch = 0 : i64, scratch_operands = 0 : i64, tpu.core_type = #tpu.core_type<tc>, window_params = [{pipeline_mode = #tpu.pipeline_mode<synchronous>, transform_indices = @transform_0, window_bounds = array<i64: 8, 32>}, {transform_indices = @transform_1, window_bounds = array<i64: 32, 128>}, {pipeline_mode = #tpu.pipeline_mode<synchronous>, transform_indices = @transform_2, window_bounds = array<i64: 8, 1>}, {transform_indices = @transform_3, window_bounds = array<i64: 8, 128>}]} {
    %c0 = arith.constant 0 : index
    %c0_0 = arith.constant 0 : index
    %0 = vector.load %arg1[%c0, %c0_0] : memref<8x32xbf16, #tpu.memory_space<vmem>>, vector<8x32xbf16>
    %c0_1 = arith.constant 0 : index
    %c0_2 = arith.constant 0 : index
    %1 = vector.load %arg2[%c0_1, %c0_2] : memref<32x128xbf16, #tpu.memory_space<vmem>>, vector<32x128xbf16>
    %cst = arith.constant dense<0.000000e+00> : vector<8x128xf32>
    %2 = tpu.matmul %0, %1, %cst {dimension_numbers = #tpu.dot_dimension_numbers<[1], [0], [0], [1], [0, 0, 1, 1], [], []>} : vector<8x32xbf16>, vector<32x128xbf16>, vector<8x128xf32> -> vector<8x128xf32>
    %c0_3 = arith.constant 0 : index
    %c0_4 = arith.constant 0 : index
    %3 = vector.load %arg3[%c0_3, %c0_4] : memref<8x1xf32, #tpu.memory_space<vmem>>, vector<8x1xf32>
    %4 = vector.broadcast %3 : vector<8x1xf32> to vector<8x128xf32>
    %5 = arith.addf %2, %4 : vector<8x128xf32>
    %cst_5 = arith.constant 0.000000e+00 : f32
    %6 = vector.broadcast %cst_5 : f32 to vector<8x128xf32>
    %7 = arith.maximumf %5, %6 : vector<8x128xf32>
    %c0_6 = arith.constant 0 : index
    %c0_7 = arith.constant 0 : index
    %8 = vector.load %arg4[%c0_6, %c0_7] : memref<8x128xf32, #tpu.memory_space<vmem>>, vector<8x128xf32>
    tpu.vector_store %arg4[%c0_6, %c0_7], %7 {strides = array<i32>} : memref<8x128xf32, #tpu.memory_space<vmem>>, vector<8x128xf32>,
    return
  }
  func.func @transform_0(%arg0: i32) -> (i32, i32) {
    %c0_i32 = arith.constant 0 : i32
    %c0_i32_0 = arith.constant 0 : i32
    %c0_i32_1 = arith.constant 0 : i32
    return %c0_i32, %c0_i32_0 : i32, i32
  }
  func.func @transform_1(%arg0: i32) -> (i32, i32) {
    %c0_i32 = arith.constant 0 : i32
    %c0_i32_0 = arith.constant 0 : i32
    return %c0_i32, %arg0 : i32, i32
  }
  func.func @transform_2(%arg0: i32) -> (i32, i32) {
    %c0_i32 = arith.constant 0 : i32
    %c0_i32_0 = arith.constant 0 : i32
    %c0_i32_1 = arith.constant 0 : i32
    return %c0_i32, %c0_i32_0 : i32, i32
  }
  func.func @transform_3(%arg0: i32) -> (i32, i32) {
    %c0_i32 = arith.constant 0 : i32
    %c0_i32_0 = arith.constant 0 : i32
    return %c0_i32, %arg0 : i32, i32
  }
}

</mosaic_0001>

<llo_original>
// kernel: tpu_custom_call.1
$region0: #{tpu_custom_call.1}
  #allocation0 [shape = 'u32[]', space=smem, size = 0x4, offset = 0x4, fixed_abs, tag = 'smem constant byte address 0x4 - core index']
  #allocation1 [shape = 'u32[144,128]{1,0:T(1,128)}', space=vmem, size = 0x12000, scoped, tag = 'internal scratch']
  %s0 = inlined_call_operand.vmem [shape: bf16[8,32], index: 0, kind: input, shape index: {}]
  %s1 = inlined_call_operand.hbm [shape: bf16[32,128], index: 1, kind: input, shape index: {}]
  %s2 = inlined_call_operand.vmem [shape: f32[8,1], index: 2, kind: input, shape index: {}]
  %s3 = inlined_call_operand.hbm [shape: f32[8,128], index: 3, kind: output, shape index: {}]
  %s4 = sld [smem:[#allocation0]]
  $region26: #{tpu_custom_call.1} parent=0
    _
  %s6 = ssub.s32 1, %s4
  %s7 = scalar_select 0, %s6, %s4
  $region1: #{tpu_custom_call.1} parent=0
    #allocation2 [shape = 'u8[8192]{0}', space=vmem, size = 0x2000, scoped, tag = 'input window, operand 1, single buffered']
    #allocation3 [shape = 's32[1]{0}', space=sflag, size = 0x4, scoped, tag = 'scoped memory for tpu_custom_call.1']
    #allocation4 [shape = 's32[1]{0}', space=sflag, size = 0x4, scoped, tag = 'scoped memory for tpu_custom_call.1']
    #allocation5 [shape = 'u8[4096]{0}', space=vmem, size = 0x1000, scoped, tag = 'output window, operand 0, single buffered']
    %8 = vsyncpa [#allocation3], 0
    %9 = vsyncpa [#allocation4], 0
    // Predicated region
    $region2: #{tpu_custom_call.1} parent=1 // pred_check
      _
    $region3: #{tpu_custom_call.1} parent=1 // pred_check_branch
      %11 = sbr.rel (0) target = $region5
    $region4: #{tpu_custom_call.1} parent=1 // pred_region
      _
    $region5: #{tpu_custom_call.1} parent=1 // pred_fallthru
      _
    // Predicated region
    $region6: #{tpu_custom_call.1} parent=1 // pred_check
      _
    $region7: #{tpu_custom_call.1} parent=1 // pred_check_branch
      %13 = sbr.rel (0) target = $region9
    $region8: #{tpu_custom_call.1} parent=1 // pred_region
      %s15 = ssub.s32 256, 256
      %16 = vsyncadd [#allocation3], %s15
      %s17 = sshll.u32 [#allocation2], 4
      %s18 = int_to_ptr.vmem [resolvable:$true] %s17
      %23 = dma.hbm_to_vmem [thread:$0]  %s1, 256, %s18, [#allocation3], 64, 64, 4
    $region9: #{tpu_custom_call.1} parent=1 // pred_fallthru
      _
    // Predicated region
    $region10: #{tpu_custom_call.1} parent=1 // pred_check
      _
    $region11: #{tpu_custom_call.1} parent=1 // pred_check_branch
      %25 = sbr.rel (0) target = $region13
    $region12: #{tpu_custom_call.1} parent=1 // pred_region
      _
    $region13: #{tpu_custom_call.1} parent=1 // pred_fallthru
      _
    // Predicated region
    $region14: #{tpu_custom_call.1} parent=1 // pred_check
      _
    $region15: #{tpu_custom_call.1} parent=1 // pred_check_branch
      %27 = sbr.rel (0) target = $region17
    $region16: #{tpu_custom_call.1} parent=1 // pred_region
      %28 = dma.done [#allocation3], 256
    $region17: #{tpu_custom_call.1} parent=1 // pred_fallthru
      _
    %v30 = vld [vmem:[%s0] sm:$0xf]
    %v31 = vld [vmem:[#allocation2] sm:$0xf]
    %v32 = vld [vmem:[#allocation2 + $0x4] sm:$0xf]
    %v33 = vld [vmem:[#allocation2 + $0x8] sm:$0xf]
    %v34 = vld [vmem:[#allocation2 + $0xc] sm:$0xf]
    %v35 = vld [vmem:[%s2] sm:$0xff]
    %37 = vset.pattern.permute.xlu0 0
    %38 = vperm.xlu0 %37, %v35
    %v39 = vpop.permute.xlu0 %38
    %v45 = vunpack.c.l.b16 %v31
    %v46 = vunpack.c.l.b16 %v32
    %v47 = vunpack.c.l.b16 %v33
    %v48 = vunpack.c.l.b16 %v34
    %v49 = vpack.c.b16 %v46, %v45
    %v50 = vpack.c.b16 %v48, %v47
    %vm53 = vcmask 261120
    %v55 = vsel %vm53, %v30, 0
    %57 = vmatprep.subr.bf16.mxu0 0
    %58 = vmatpush1.bf16.msra.mxu0 %v49
    %59 = vmatprep.subr.bf16.mxu0 0
    %60 = vmatpush1.bf16.msra.mxu0 %v50
    %61 = vmatprep.subr.bf16.mxu0 0
    %62 = vmatpush1.bf16.msra.mxu0 0
    %63 = vmatprep.subr.bf16.mxu0 0
    %64 = vmatpush1.bf16.msra.mxu0 0
    %65 = vmatprep.subr.bf16.mxu0 0
    %66 = vmatpush1.bf16.msra.mxu0 0
    %67 = vmatprep.subr.bf16.mxu0 0
    %68 = vmatpush1.bf16.msra.mxu0 0
    %69 = vmatprep.subr.bf16.mxu0 0
    %70 = vmatpush1.bf16.msra.mxu0 0
    %71 = vmatprep.subr.bf16.mxu0 0
    %72 = vmatpush1.bf16.msra.mxu0 0
    %73 = vmatprep.subr.bf16.mxu0 0
    %74 = vmatpush1.bf16.msra.mxu0 0
    %75 = vmatprep.subr.bf16.mxu0 0
    %76 = vmatpush1.bf16.msra.mxu0 0
    %77 = vmatprep.subr.bf16.mxu0 0
    %78 = vmatpush1.bf16.msra.mxu0 0
    %79 = vmatprep.subr.bf16.mxu0 0
    %80 = vmatpush1.bf16.msra.mxu0 0
    %81 = vmatprep.subr.bf16.mxu0 0
    %82 = vmatpush1.bf16.msra.mxu0 0
    %83 = vmatprep.subr.bf16.mxu0 0
    %84 = vmatpush1.bf16.msra.mxu0 0
    %85 = vmatprep.subr.bf16.mxu0 0
    %86 = vmatpush1.bf16.msra.mxu0 0
    %87 = vmatprep.subr.bf16.mxu0 0
    %88 = vmatpush1.bf16.msra.mxu0 0
    %89 = vmatprep.mubr.bf16.mxu0 0
    %90 = vmatmul.mubr.bf16.gmra.mrb[0].mxu0 %v55
    %v91 = vpop.f32.mrb[0].mxu0
    %v92 = vadd.f32 %v39, %v91
    %v93 = vpop.f32.mrb[0].mxu0
    %v94 = vpop.f32.mrb[0].mxu0
    %v95 = vpop.f32.mrb[0].mxu0
    %96 = vdwg.mxu0
    %v97 = vmax.f32 %v92, 0.0
    %98 = vst [vmem:[#allocation5] sm:$0xff] %v97
    // Predicated region
    $region18: #{tpu_custom_call.1} parent=1 // pred_check
      _
    $region19: #{tpu_custom_call.1} parent=1 // pred_check_branch
      %100 = sbr.rel (0) target = $region21
    $region20: #{tpu_custom_call.1} parent=1 // pred_region
      %s102 = ssub.s32 128, 128
      %103 = vsyncadd [#allocation4], %s102
      %s105 = sshll.u32 [#allocation5], 4
      %s106 = int_to_ptr.vmem [resolvable:$true] %s105
      %108 = dma.vmem_to_hbm [thread:$0]  %s106, 128, %s3, [#allocation4]
    $region21: #{tpu_custom_call.1} parent=1 // pred_fallthru
      _
    // Predicated region
    $region22: #{tpu_custom_call.1} parent=1 // pred_check
      _
    $region23: #{tpu_custom_call.1} parent=1 // pred_check_branch
      %110 = sbr.rel (0) target = $region25
    $region24: #{tpu_custom_call.1} parent=1 // pred_region
      %111 = dma.done [#allocation4], 128
    $region25: #{tpu_custom_call.1} parent=1 // pred_fallthru
      _
    %112 = vsyncpa [#allocation3], 1
    %113 = vsyncpa [#allocation4], 1

</llo_original>
